<compile_context>
chip_gen: v5e
topology: v5e:2x2
jax: 0.10.0
libtpu: 0.0.40
codegen_flags: <defaults>
</compile_context>

<pallas_src>
import functools

import jax
import jax.numpy as jnp
from jax.experimental import pallas as pl
from jax.experimental.pallas import tpu as pltpu


def _round_up(x, m):
    return ((x + m - 1) // m) * m


# ---------------------------------------------------------------------------
# Fused kernel. Activations live as a flat (B*T, C) slab (T multiple of 8).
# ---------------------------------------------------------------------------
def _fused_tcn_kernel(*refs, B, T, K, head, use_masks, skip_flags):
    # refs = [x (B*T, C0) f32,
    #         per block: w1 (K*Cin, Cout or 2*Cout) bf16, b1 (1, same) f32,
    #                    w2 (K*Cout, Cout) bf16,          b2 (1, Cout) f32,
    #         fc_w (Clast, Opad) bf16, fc_b (1, Opad) f32,
    #         out (Bpad, Opad) f32]
    x_ref = refs[0]
    out_ref = refs[-1]
    prm = refs[1:-1]

    h = x_ref[...].astype(jnp.float32)                        # (B*T, C0)

    # Hoisted causal masks (only needed when the window is the whole short
    # sequence, L < rf; otherwise roll-wrap garbage never reaches row T-1).
    if use_masks and K > 1:
        t_real = (jax.lax.broadcasted_iota(jnp.int32, (B * T, 1), 0) % T) - head
        masks = [t_real >= s for s in range(1, K)]            # (B*T, 1) bool
    else:
        masks = None

    def causal_im2col(v):
        # tap with time-shift s: row t reads v[t-s]; conv weight index is
        # j = K-1-s, so taps are concatenated in descending-shift order to
        # match w.reshape(K*C, Cout).
        taps = [v]                                            # shift 0
        for s in range(1, K):
            r = pltpu.roll(v, shift=s, axis=0)                # sublane roll (XLU)
            if masks is not None:
                r = jnp.where(masks[s - 1], r, 0.0)
            taps.append(r)
        # per-tap bf16 cast: halves the concat footprint, rolls stay f32
        return jnp.concatenate([t.astype(jnp.bfloat16) for t in taps[::-1]],
                               axis=-1)                       # (B*T, K*C) bf16

    p = 0
    for has_skip in skip_flags:
        w1, b1, w2, b2 = prm[p], prm[p + 1], prm[p + 2], prm[p + 3]
        p += 4
        c_out = w2.shape[-1]

        y1 = jnp.dot(causal_im2col(h), w1[...],
                     preferred_element_type=jnp.float32) + b1[...]
        if has_skip:
            # conv1 and the 1x1 skip share one MXU dot; split output lanes.
            h1 = jnp.maximum(y1[:, :c_out], 0.0)
            res = y1[:, c_out:]                               # h @ ws + bs
        else:
            h1 = jnp.maximum(y1, 0.0)
            res = h                                           # identity skip
        h2 = jnp.dot(causal_im2col(h1), w2[...],
                     preferred_element_type=jnp.float32) + b2[...]
        h2 = jnp.maximum(h2, 0.0)
        h = jnp.maximum(h2 + res, 0.0)
        # TODO(synk): for deep TCNs, shrink the active time window per block
        # (block i only needs the last (nblocks-i)*2*(K-1)+1 rows).

    fc_w, fc_b = prm[p], prm[p + 1]
    c_last = h.shape[-1]
    B_pad = out_ref.shape[0]
    # single strided extraction of the last time step of every sequence
    last = h.reshape(B, T, c_last)[:, T - 1, :]               # (B, c_last)
    if B_pad > B:
        last = jnp.concatenate(
            [last, jnp.zeros((B_pad - B, c_last), last.dtype)], axis=0)
    out = jnp.dot(last.astype(jnp.bfloat16), fc_w[...],
                  preferred_element_type=jnp.float32) + fc_b[...]
    out_ref[...] = out.astype(out_ref.dtype)                  # (B_pad, 128): full vst


# ---------------------------------------------------------------------------
# TCNmodel forward (single fused pallas_call)
# ---------------------------------------------------------------------------
def tcn_model(x, params, *, kernel_size):
    B, L, C_in = x.shape
    K = kernel_size
    blocks = params["blocks"]
    n_blocks = len(blocks)

    # Only the last time step feeds the FC -> only its receptive field matters.
    rf = n_blocks * 2 * (K - 1) + 1
    W = min(L, rf)
    T = max(8, _round_up(W, 8))
    head = T - W
    # If L >= rf the final row is exact without any causal masking (wrap/pad
    # garbage stays outside its receptive field).  If L < rf we must emulate
    # the per-layer zero padding, anchored at the real sequence start.
    use_masks = L < rf

    xw = jnp.zeros((B, T, C_in), jnp.float32)
    xw = xw.at[:, head:, :].set(x[:, L - W:, :].astype(jnp.float32))
    xflat = xw.reshape(B * T, C_in)

    inputs = [xflat]
    skip_flags = []
    c_prev = C_in
    for blk in blocks:
        c_out = blk["w1"].shape[-1]
        has_skip = bool(blk["has_skip"])
        w1f = blk["w1"].reshape(K * c_prev, c_out).astype(jnp.float32)
        if has_skip:
            # Fuse the 1x1 skip into conv1: shift-0-tap rows carry ws in the
            # extra c_out output lanes, zeros elsewhere.
            w1w = jnp.zeros((K * c_prev, 2 * c_out), jnp.float32)
            w1w = w1w.at[:, :c_out].set(w1f)
            w1w = w1w.at[(K - 1) * c_prev:, c_out:].set(blk["ws"])
            b1w = jnp.concatenate([blk["b1"], blk["bs"]], axis=-1)
        else:
            w1w, b1w = w1f, blk["b1"]
        inputs += [w1w.astype(jnp.bfloat16), b1w.astype(jnp.float32),
                   blk["w2"].reshape(K * c_out, c_out).astype(jnp.bfloat16),
                   blk["b2"].astype(jnp.float32)]
        skip_flags.append(has_skip)
        c_prev = c_out

    O = params["fc_w"].shape[-1]
    O_pad = _round_up(max(O, 128), 128)          # lane-dense output store
    B_pad = _round_up(max(B, 8), 8)              # sublane-dense output store
    fc_w = jnp.zeros((c_prev, O_pad), jnp.float32).at[:, :O].set(params["fc_w"])
    fc_b = jnp.zeros((1, O_pad), jnp.float32).at[:, :O].set(params["fc_b"])
    inputs += [fc_w.astype(jnp.bfloat16), fc_b.astype(jnp.float32)]

    # VMEM budget check (v7x has only 64 MiB physical / 32 MiB scoped default).
    c_max = max([C_in] + [blk["w1"].shape[-1] for blk in blocks])
    est_bytes = (sum(a.size * a.dtype.itemsize for a in inputs)
                 + B * T * c_max * 4 * 4          # resident f32 activation slabs
                 + B * T * K * c_max * 2 * 2      # bf16 im2col temporaries
                 + B_pad * O_pad * 4)
    vmem_limit = 32 * 1024 * 1024
    assert est_bytes < vmem_limit, (
        "fused-resident TCN exceeds VMEM budget; "
        "TODO(synk): stream block weights over a grid axis instead")

    kernel = functools.partial(_fused_tcn_kernel, B=B, T=T, K=K, head=head,
                               use_masks=use_masks,
                               skip_flags=tuple(skip_flags))
    # No grid: single invocation, all operands resident in VMEM (no
    # double-buffering of weights).
    # TODO(synk): for large B, add a "parallel" batch grid axis to use the
    # second TensorCore on v7x.
    out_pad = pl.pallas_call(
        kernel,
        out_shape=jax.ShapeDtypeStruct((B_pad, O_pad), jnp.float32),
        in_specs=[pl.BlockSpec(memory_space=pltpu.MemorySpace.VMEM)
                  for _ in inputs],
        out_specs=pl.BlockSpec(memory_space=pltpu.MemorySpace.VMEM),
        compiler_params=pltpu.CompilerParams(vmem_limit_bytes=vmem_limit),
    )(*inputs)
    # TODO(synk): dropout is identity here (inference/eval semantics only).
    return out_pad[:B, :O]


# ---------------------------------------------------------------------------
# Params + pure-JAX reference (full-sequence, f32) for validation
# ---------------------------------------------------------------------------
def init_params(key, input_size, num_channels, kernel_size, output_size):
    blocks = []
    c_in = input_size
    for c_out in num_channels:
        key, k1, k2, k3, k4, k5, k6 = jax.random.split(key, 7)
        blk = dict(
            w1=0.1 * jax.random.normal(k1, (kernel_size, c_in, c_out), jnp.float32),
            b1=0.1 * jax.random.normal(k2, (1, c_out), jnp.float32),
            w2=0.1 * jax.random.normal(k3, (kernel_size, c_out, c_out), jnp.float32),
            b2=0.1 * jax.random.normal(k4, (1, c_out), jnp.float32),
            has_skip=(c_in != c_out))
        if blk["has_skip"]:
            blk["ws"] = 0.1 * jax.random.normal(k5, (c_in, c_out), jnp.float32)
            blk["bs"] = 0.1 * jax.random.normal(k6, (1, c_out), jnp.float32)
        blocks.append(blk)
        c_in = c_out
    key, kf1, kf2 = jax.random.split(key, 3)
    fc_w = 0.1 * jax.random.normal(kf1, (num_channels[-1], output_size), jnp.float32)
    fc_b = 0.1 * jax.random.normal(kf2, (1, output_size), jnp.float32)
    return dict(blocks=blocks, fc_w=fc_w, fc_b=fc_b)


def _reference(x, params, *, kernel_size):
    K = kernel_size
    h = x.astype(jnp.float32)

    def cconv(v, w, b):
        Bv, Lv, Ci = v.shape
        vp = jnp.concatenate([jnp.zeros((Bv, K - 1, Ci), v.dtype), v], axis=1)
        y = jnp.zeros((Bv, Lv, w.shape[-1]), jnp.float32) + b
        for j in range(K):
            y = y + jnp.einsum("blc,co->blo", vp[:, j:j + Lv, :], w[j])
        return y

    for blk in params["blocks"]:
        res = h
        h1 = jax.nn.relu(cconv(h, blk["w1"], blk["b1"]))
        h2 = jax.nn.relu(cconv(h1, blk["w2"], blk["b2"]))
        if blk["has_skip"]:
            res = jnp.einsum("blc,co->blo", res, blk["ws"]) + blk["bs"]
        h = jax.nn.relu(h2 + res)
    return h[:, -1, :] @ params["fc_w"] + params["fc_b"]


if __name__ == "__main__":
    key = jax.random.PRNGKey(0)

    # args: input_size=4, output_size=5, num_channels=[8, 16], kernel_size=3
    B = 2
    input_size, output_size = 4, 5
    num_channels = [8, 16]
    kernel_size = 3

    key, kp = jax.random.split(key)
    params = init_params(kp, input_size, num_channels, kernel_size, output_size)

    # Test 1: L >= receptive field (mask-free fast path).
    key, kx1 = jax.random.split(key)
    x1 = jax.random.normal(kx1, (B, 16, input_size), jnp.float32)
    out1 = jax.block_until_ready(tcn_model(x1, params, kernel_size=kernel_size))
    assert out1.shape == (B, output_size), out1.shape
    assert bool(jnp.all(jnp.isfinite(out1)))
    ref1 = _reference(x1, params, kernel_size=kernel_size)
    assert jnp.allclose(out1, ref1, atol=5e-2, rtol=5e-2), (out1, ref1)

    # Test 2: L < receptive field (masked path, real-boundary causal padding).
    key, kx2 = jax.random.split(key)
    x2 = jax.random.normal(kx2, (B, 4, input_size), jnp.float32)
    out2 = jax.block_until_ready(tcn_model(x2, params, kernel_size=kernel_size))
    ref2 = _reference(x2, params, kernel_size=kernel_size)
    assert jnp.allclose(out2, ref2, atol=5e-2, rtol=5e-2), (out2, ref2)

    print("KERNEL_OK")
</pallas_src>

<mosaic_0001>
module attributes {stable_mosaic.version = 11 : i64} {
  func.func @_fused_tcn_kernel(%arg0: memref<32x4xf32, #tpu.memory_space<vmem>>, %arg1: memref<12x16xbf16, #tpu.memory_space<vmem>>, %arg2: memref<1x16xf32, #tpu.memory_space<vmem>>, %arg3: memref<24x8xbf16, #tpu.memory_space<vmem>>, %arg4: memref<1x8xf32, #tpu.memory_space<vmem>>, %arg5: memref<24x32xbf16, #tpu.memory_space<vmem>>, %arg6: memref<1x32xf32, #tpu.memory_space<vmem>>, %arg7: memref<48x16xbf16, #tpu.memory_space<vmem>>, %arg8: memref<1x16xf32, #tpu.memory_space<vmem>>, %arg9: memref<16x128xbf16, #tpu.memory_space<vmem>>, %arg10: memref<1x128xf32, #tpu.memory_space<vmem>>, %arg11: memref<8x128xf32, #tpu.memory_space<vmem>>) attributes {dimension_semantics = [], scalar_prefetch = 0 : i64, scratch_operands = 0 : i64, tpu.core_type = #tpu.core_type<tc>} {
    %c0 = arith.constant 0 : index
    %c0_0 = arith.constant 0 : index
    %0 = vector.load %arg0[%c0, %c0_0] : memref<32x4xf32, #tpu.memory_space<vmem>>, vector<32x4xf32>
    %c1_i32 = arith.constant 1 : i32
    %1 = tpu.dynamic_rotate %0 by %c1_i32 dim 0 : vector<32x4xf32>, i32 -> vector<32x4xf32>
    %c2_i32 = arith.constant 2 : i32
    %2 = tpu.dynamic_rotate %0 by %c2_i32 dim 0 : vector<32x4xf32>, i32 -> vector<32x4xf32>
    %3 = arith.truncf %2 : vector<32x4xf32> to vector<32x4xbf16>
    %4 = arith.truncf %1 : vector<32x4xf32> to vector<32x4xbf16>
    %5 = arith.truncf %0 : vector<32x4xf32> to vector<32x4xbf16>
    %6 = tpu.concatenate %3, %4, %5 in 1 : vector<32x4xbf16>, vector<32x4xbf16>, vector<32x4xbf16> -> vector<32x12xbf16>
    %c0_1 = arith.constant 0 : index
    %c0_2 = arith.constant 0 : index
    %7 = vector.load %arg1[%c0_1, %c0_2] : memref<12x16xbf16, #tpu.memory_space<vmem>>, vector<12x16xbf16>
    %cst = arith.constant dense<0.000000e+00> : vector<32x16xf32>
    %8 = tpu.matmul %6, %7, %cst {dimension_numbers = #tpu.dot_dimension_numbers<[1], [0], [0], [1], [0, 0, 1, 1], [], []>} : vector<32x12xbf16>, vector<12x16xbf16>, vector<32x16xf32> -> vector<32x16xf32>
    %c0_3 = arith.constant 0 : index
    %c0_4 = arith.constant 0 : index
    %9 = vector.load %arg2[%c0_3, %c0_4] : memref<1x16xf32, #tpu.memory_space<vmem>>, vector<1x16xf32>
    %10 = vector.broadcast %9 : vector<1x16xf32> to vector<32x16xf32>
    %11 = arith.addf %8, %10 : vector<32x16xf32>
    %12 = vector.extract_strided_slice %11 {offsets = [0, 0], sizes = [32, 8], strides = [1, 1]} : vector<32x16xf32> to vector<32x8xf32>
    %cst_5 = arith.constant 0.000000e+00 : f32
    %13 = vector.broadcast %cst_5 : f32 to vector<32x8xf32>
    %14 = arith.maximumf %12, %13 : vector<32x8xf32>
    %15 = vector.extract_strided_slice %11 {offsets = [0, 8], sizes = [32, 8], strides = [1, 1]} : vector<32x16xf32> to vector<32x8xf32>
    %c1_i32_6 = arith.constant 1 : i32
    %16 = tpu.dynamic_rotate %14 by %c1_i32_6 dim 0 : vector<32x8xf32>, i32 -> vector<32x8xf32>
    %c2_i32_7 = arith.constant 2 : i32
    %17 = tpu.dynamic_rotate %14 by %c2_i32_7 dim 0 : vector<32x8xf32>, i32 -> vector<32x8xf32>
    %18 = arith.truncf %17 : vector<32x8xf32> to vector<32x8xbf16>
    %19 = arith.truncf %16 : vector<32x8xf32> to vector<32x8xbf16>
    %20 = arith.truncf %14 : vector<32x8xf32> to vector<32x8xbf16>
    %21 = tpu.concatenate %18, %19, %20 in 1 : vector<32x8xbf16>, vector<32x8xbf16>, vector<32x8xbf16> -> vector<32x24xbf16>
    %c0_8 = arith.constant 0 : index
    %c0_9 = arith.constant 0 : index
    %22 = vector.load %arg3[%c0_8, %c0_9] : memref<24x8xbf16, #tpu.memory_space<vmem>>, vector<24x8xbf16>
    %cst_10 = arith.constant dense<0.000000e+00> : vector<32x8xf32>
    %23 = tpu.matmul %21, %22, %cst_10 {dimension_numbers = #tpu.dot_dimension_numbers<[1], [0], [0], [1], [0, 0, 1, 1], [], []>} : vector<32x24xbf16>, vector<24x8xbf16>, vector<32x8xf32> -> vector<32x8xf32>
    %c0_11 = arith.constant 0 : index
    %c0_12 = arith.constant 0 : index
    %24 = vector.load %arg4[%c0_11, %c0_12] : memref<1x8xf32, #tpu.memory_space<vmem>>, vector<1x8xf32>
    %25 = vector.broadcast %24 : vector<1x8xf32> to vector<32x8xf32>
    %26 = arith.addf %23, %25 : vector<32x8xf32>
    %cst_13 = arith.constant 0.000000e+00 : f32
    %27 = vector.broadcast %cst_13 : f32 to vector<32x8xf32>
    %28 = arith.maximumf %26, %27 : vector<32x8xf32>
    %29 = arith.addf %28, %15 : vector<32x8xf32>
    %cst_14 = arith.constant 0.000000e+00 : f32
    %30 = vector.broadcast %cst_14 : f32 to vector<32x8xf32>
    %31 = arith.maximumf %29, %30 : vector<32x8xf32>
    %c1_i32_15 = arith.constant 1 : i32
    %32 = tpu.dynamic_rotate %31 by %c1_i32_15 dim 0 : vector<32x8xf32>, i32 -> vector<32x8xf32>
    %c2_i32_16 = arith.constant 2 : i32
    %33 = tpu.dynamic_rotate %31 by %c2_i32_16 dim 0 : vector<32x8xf32>, i32 -> vector<32x8xf32>
    %34 = arith.truncf %33 : vector<32x8xf32> to vector<32x8xbf16>
    %35 = arith.truncf %32 : vector<32x8xf32> to vector<32x8xbf16>
    %36 = arith.truncf %31 : vector<32x8xf32> to vector<32x8xbf16>
    %37 = tpu.concatenate %34, %35, %36 in 1 : vector<32x8xbf16>, vector<32x8xbf16>, vector<32x8xbf16> -> vector<32x24xbf16>
    %c0_17 = arith.constant 0 : index
    %c0_18 = arith.constant 0 : index
    %38 = vector.load %arg5[%c0_17, %c0_18] : memref<24x32xbf16, #tpu.memory_space<vmem>>, vector<24x32xbf16>
    %cst_19 = arith.constant dense<0.000000e+00> : vector<32x32xf32>
    %39 = tpu.matmul %37, %38, %cst_19 {dimension_numbers = #tpu.dot_dimension_numbers<[1], [0], [0], [1], [0, 0, 1, 1], [], []>} : vector<32x24xbf16>, vector<24x32xbf16>, vector<32x32xf32> -> vector<32x32xf32>
    %c0_20 = arith.constant 0 : index
    %c0_21 = arith.constant 0 : index
    %40 = vector.load %arg6[%c0_20, %c0_21] : memref<1x32xf32, #tpu.memory_space<vmem>>, vector<1x32xf32>
    %41 = vector.broadcast %40 : vector<1x32xf32> to vector<32x32xf32>
    %42 = arith.addf %39, %41 : vector<32x32xf32>
    %43 = vector.extract_strided_slice %42 {offsets = [0, 0], sizes = [32, 16], strides = [1, 1]} : vector<32x32xf32> to vector<32x16xf32>
    %cst_22 = arith.constant 0.000000e+00 : f32
    %44 = vector.broadcast %cst_22 : f32 to vector<32x16xf32>
    %45 = arith.maximumf %43, %44 : vector<32x16xf32>
    %46 = vector.extract_strided_slice %42 {offsets = [0, 16], sizes = [32, 16], strides = [1, 1]} : vector<32x32xf32> to vector<32x16xf32>
    %c1_i32_23 = arith.constant 1 : i32
    %47 = tpu.dynamic_rotate %45 by %c1_i32_23 dim 0 : vector<32x16xf32>, i32 -> vector<32x16xf32>
    %c2_i32_24 = arith.constant 2 : i32
    %48 = tpu.dynamic_rotate %45 by %c2_i32_24 dim 0 : vector<32x16xf32>, i32 -> vector<32x16xf32>
    %49 = arith.truncf %48 : vector<32x16xf32> to vector<32x16xbf16>
    %50 = arith.truncf %47 : vector<32x16xf32> to vector<32x16xbf16>
    %51 = arith.truncf %45 : vector<32x16xf32> to vector<32x16xbf16>
    %52 = tpu.concatenate %49, %50, %51 in 1 : vector<32x16xbf16>, vector<32x16xbf16>, vector<32x16xbf16> -> vector<32x48xbf16>
    %c0_25 = arith.constant 0 : index
    %c0_26 = arith.constant 0 : index
    %53 = vector.load %arg7[%c0_25, %c0_26] : memref<48x16xbf16, #tpu.memory_space<vmem>>, vector<48x16xbf16>
    %cst_27 = arith.constant dense<0.000000e+00> : vector<32x16xf32>
    %54 = tpu.matmul %52, %53, %cst_27 {dimension_numbers = #tpu.dot_dimension_numbers<[1], [0], [0], [1], [0, 0, 1, 1], [], []>} : vector<32x48xbf16>, vector<48x16xbf16>, vector<32x16xf32> -> vector<32x16xf32>
    %c0_28 = arith.constant 0 : index
    %c0_29 = arith.constant 0 : index
    %55 = vector.load %arg8[%c0_28, %c0_29] : memref<1x16xf32, #tpu.memory_space<vmem>>, vector<1x16xf32>
    %56 = vector.broadcast %55 : vector<1x16xf32> to vector<32x16xf32>
    %57 = arith.addf %54, %56 : vector<32x16xf32>
    %cst_30 = arith.constant 0.000000e+00 : f32
    %58 = vector.broadcast %cst_30 : f32 to vector<32x16xf32>
    %59 = arith.maximumf %57, %58 : vector<32x16xf32>
    %60 = arith.addf %59, %46 : vector<32x16xf32>
    %cst_31 = arith.constant 0.000000e+00 : f32
    %61 = vector.broadcast %cst_31 : f32 to vector<32x16xf32>
    %62 = arith.maximumf %60, %61 : vector<32x16xf32>
    %63 = vector.shape_cast %62 : vector<32x16xf32> to vector<2x16x16xf32>
    %64 = vector.extract_strided_slice %63 {offsets = [0, 15, 0], sizes = [2, 1, 16], strides = [1, 1, 1]} : vector<2x16x16xf32> to vector<2x1x16xf32>
    %65 = vector.shape_cast %64 : vector<2x1x16xf32> to vector<2x16xf32>
    %cst_32 = arith.constant 0.000000e+00 : f32
    %66 = vector.broadcast %cst_32 : f32 to vector<6x16xf32>
    %67 = tpu.concatenate %65, %66 in 0 : vector<2x16xf32>, vector<6x16xf32> -> vector<8x16xf32>
    %68 = arith.truncf %67 : vector<8x16xf32> to vector<8x16xbf16>
    %c0_33 = arith.constant 0 : index
    %c0_34 = arith.constant 0 : index
    %69 = vector.load %arg9[%c0_33, %c0_34] : memref<16x128xbf16, #tpu.memory_space<vmem>>, vector<16x128xbf16>
    %cst_35 = arith.constant dense<0.000000e+00> : vector<8x128xf32>
    %70 = tpu.matmul %68, %69, %cst_35 {dimension_numbers = #tpu.dot_dimension_numbers<[1], [0], [0], [1], [0, 0, 1, 1], [], []>} : vector<8x16xbf16>, vector<16x128xbf16>, vector<8x128xf32> -> vector<8x128xf32>
    %c0_36 = arith.constant 0 : index
    %c0_37 = arith.constant 0 : index
    %71 = vector.load %arg10[%c0_36, %c0_37] : memref<1x128xf32, #tpu.memory_space<vmem>>, vector<1x128xf32>
    %72 = vector.broadcast %71 : vector<1x128xf32> to vector<8x128xf32>
    %73 = arith.addf %70, %72 : vector<8x128xf32>
    %c0_38 = arith.constant 0 : index
    %c0_39 = arith.constant 0 : index
    %74 = vector.load %arg11[%c0_38, %c0_39] : memref<8x128xf32, #tpu.memory_space<vmem>>, vector<8x128xf32>
    tpu.vector_store %arg11[%c0_38, %c0_39], %73 {strides = array<i32>} : memref<8x128xf32, #tpu.memory_space<vmem>>, vector<8x128xf32>,
    return
  }
}

</mosaic_0001>

<llo_original>
// kernel: tpu_custom_call.1
$region0: #{tpu_custom_call.1}
  #allocation0 [shape = 'u32[]', space=smem, size = 0x4, offset = 0x4, fixed_abs, tag = 'smem constant byte address 0x4 - core index']
  #allocation1 [shape = 'u32[72,128]{1,0:T(1,128)}', space=vmem, size = 0x9000, scoped, tag = 'internal scratch']
  %s0 = inlined_call_operand.vmem [shape: f32[32,4], index: 0, kind: input, shape index: {}]
  %s1 = inlined_call_operand.vmem [shape: bf16[12,16], index: 1, kind: input, shape index: {}]
  %s2 = inlined_call_operand.vmem [shape: f32[1,16], index: 2, kind: input, shape index: {}]
  %s3 = inlined_call_operand.vmem [shape: bf16[24,8], index: 3, kind: input, shape index: {}]
  %s4 = inlined_call_operand.vmem [shape: f32[1,8], index: 4, kind: input, shape index: {}]
  %s5 = inlined_call_operand.vmem [shape: bf16[24,32], index: 5, kind: input, shape index: {}]
  %s6 = inlined_call_operand.vmem [shape: f32[1,32], index: 6, kind: input, shape index: {}]
  %s7 = inlined_call_operand.vmem [shape: bf16[48,16], index: 7, kind: input, shape index: {}]
  %s8 = inlined_call_operand.vmem [shape: f32[1,16], index: 8, kind: input, shape index: {}]
  %s9 = inlined_call_operand.vmem [shape: bf16[16,128], index: 9, kind: input, shape index: {}]
  %s10 = inlined_call_operand.vmem [shape: f32[1,128], index: 10, kind: input, shape index: {}]
  %s11 = inlined_call_operand.hbm [shape: f32[8,128], index: 11, kind: output, shape index: {}]
  %s12 = sld [smem:[#allocation0]]
  $region54: #{tpu_custom_call.1} parent=0
    _
  %s14 = ssub.s32 1, %s12
  %s15 = scalar_select 0, %s14, %s12
  $region1: #{tpu_custom_call.1} parent=0
    #allocation2 [shape = 'u8[4096]{0}', space=vmem, size = 0x1000, scoped, tag = 'output window, operand 0, single buffered']
    #allocation3 [shape = 's32[1]{0}', space=sflag, size = 0x4, scoped, tag = 'scoped memory for tpu_custom_call.1']
    %16 = vsyncpa [#allocation3], 0
    // Predicated region
    $region2: #{tpu_custom_call.1} parent=1 // pred_check
      _
    $region3: #{tpu_custom_call.1} parent=1 // pred_check_branch
      %18 = sbr.rel (0) target = $region5
    $region4: #{tpu_custom_call.1} parent=1 // pred_region
      _
    $region5: #{tpu_custom_call.1} parent=1 // pred_fallthru
      _
    // Predicated region
    $region6: #{tpu_custom_call.1} parent=1 // pred_check
      _
    $region7: #{tpu_custom_call.1} parent=1 // pred_check_branch
      %20 = sbr.rel (0) target = $region9
    $region8: #{tpu_custom_call.1} parent=1 // pred_region
      _
    $region9: #{tpu_custom_call.1} parent=1 // pred_fallthru
      _
    // Predicated region
    $region10: #{tpu_custom_call.1} parent=1 // pred_check
      _
    $region11: #{tpu_custom_call.1} parent=1 // pred_check_branch
      %22 = sbr.rel (0) target = $region13
    $region12: #{tpu_custom_call.1} parent=1 // pred_region
      _
    $region13: #{tpu_custom_call.1} parent=1 // pred_fallthru
      _
    // Predicated region
    $region14: #{tpu_custom_call.1} parent=1 // pred_check
      _
    $region15: #{tpu_custom_call.1} parent=1 // pred_check_branch
      %24 = sbr.rel (0) target = $region17
    $region16: #{tpu_custom_call.1} parent=1 // pred_region
      _
    $region17: #{tpu_custom_call.1} parent=1 // pred_fallthru
      _
    // Predicated region
    $region18: #{tpu_custom_call.1} parent=1 // pred_check
      _
    $region19: #{tpu_custom_call.1} parent=1 // pred_check_branch
      %26 = sbr.rel (0) target = $region21
    $region20: #{tpu_custom_call.1} parent=1 // pred_region
      _
    $region21: #{tpu_custom_call.1} parent=1 // pred_fallthru
      _
    // Predicated region
    $region22: #{tpu_custom_call.1} parent=1 // pred_check
      _
    $region23: #{tpu_custom_call.1} parent=1 // pred_check_branch
      %28 = sbr.rel (0) target = $region25
    $region24: #{tpu_custom_call.1} parent=1 // pred_region
      _
    $region25: #{tpu_custom_call.1} parent=1 // pred_fallthru
      _
    // Predicated region
    $region26: #{tpu_custom_call.1} parent=1 // pred_check
      _
    $region27: #{tpu_custom_call.1} parent=1 // pred_check_branch
      %30 = sbr.rel (0) target = $region29
    $region28: #{tpu_custom_call.1} parent=1 // pred_region
      _
    $region29: #{tpu_custom_call.1} parent=1 // pred_fallthru
      _
    // Predicated region
    $region30: #{tpu_custom_call.1} parent=1 // pred_check
      _
    $region31: #{tpu_custom_call.1} parent=1 // pred_check_branch
      %32 = sbr.rel (0) target = $region33
    $region32: #{tpu_custom_call.1} parent=1 // pred_region
      _
    $region33: #{tpu_custom_call.1} parent=1 // pred_fallthru
      _
    // Predicated region
    $region34: #{tpu_custom_call.1} parent=1 // pred_check
      _
    $region35: #{tpu_custom_call.1} parent=1 // pred_check_branch
      %34 = sbr.rel (0) target = $region37
    $region36: #{tpu_custom_call.1} parent=1 // pred_region
      _
    $region37: #{tpu_custom_call.1} parent=1 // pred_fallthru
      _
    // Predicated region
    $region38: #{tpu_custom_call.1} parent=1 // pred_check
      _
    $region39: #{tpu_custom_call.1} parent=1 // pred_check_branch
      %36 = sbr.rel (0) target = $region41
    $region40: #{tpu_custom_call.1} parent=1 // pred_region
      _
    $region41: #{tpu_custom_call.1} parent=1 // pred_fallthru
      _
    // Predicated region
    $region42: #{tpu_custom_call.1} parent=1 // pred_check
      _
    $region43: #{tpu_custom_call.1} parent=1 // pred_check_branch
      %38 = sbr.rel (0) target = $region45
    $region44: #{tpu_custom_call.1} parent=1 // pred_region
      _
    $region45: #{tpu_custom_call.1} parent=1 // pred_fallthru
      _
    %v40 = vld [vmem:[%s0] sm:$0xff]
    %v41 = vld [vmem:[%s0 + $0x8] sm:$0xff]
    %v42 = vld [vmem:[%s0 + $0x10] sm:$0xff]
    %v43 = vld [vmem:[%s0 + $0x18] sm:$0xff]
    %v44 = vrot.slane %v40, 7
    %v45 = vrot.slane %v41, 7
    %v46 = vrot.slane %v42, 7
    %v47 = vrot.slane %v43, 7
    %v48 = vlaneseq
    %v49 = vshrl.u32 %v48, 7
    %vm50 = vcmp.lt.s32.totalorder %v49, 1
    %v51 = vsel %vm50, %v46, %v47
    %v52 = vsel %vm50, %v45, %v46
    %v53 = vsel %vm50, %v44, %v45
    %v54 = vsel %vm50, %v47, %v44
    %v55 = vrot.slane %v40, 6
    %v56 = vrot.slane %v41, 6
    %v57 = vrot.slane %v42, 6
    %v58 = vrot.slane %v43, 6
    %vm59 = vcmp.lt.s32.totalorder %v49, 2
    %v60 = vsel %vm59, %v57, %v58
    %v61 = vsel %vm59, %v56, %v57
    %v62 = vsel %vm59, %v55, %v56
    %v63 = vsel %vm59, %v58, %v55
    %v64 = vpack.c.bf16 %v63, %v63
    %v65 = vpack.c.bf16 %v62, %v62
    %v66 = vpack.c.bf16 %v61, %v61
    %v67 = vpack.c.bf16 %v60, %v60
    %v68 = vpack.c.bf16 %v54, %v54
    %v69 = vpack.c.bf16 %v53, %v53
    %v70 = vpack.c.bf16 %v52, %v52
    %v71 = vpack.c.bf16 %v51, %v51
    %v72 = vpack.c.bf16 %v40, %v40
    %v73 = vpack.c.bf16 %v41, %v41
    %v74 = vpack.c.bf16 %v42, %v42
    %v75 = vpack.c.bf16 %v43, %v43
    %v80 = vunpack.c.l.b16 %v64
    %v81 = vunpack.c.l.b16 %v65
    %v82 = vunpack.c.l.b16 %v66
    %v83 = vunpack.c.l.b16 %v67
    %v84 = vpack.c.b16 %v81, %v80
    %v85 = vpack.c.b16 %v83, %v82
    %v90 = vunpack.c.l.b16 %v68
    %v91 = vunpack.c.l.b16 %v69
    %v92 = vunpack.c.l.b16 %v70
    %v93 = vunpack.c.l.b16 %v71
    %v94 = vpack.c.b16 %v91, %v90
    %v95 = vpack.c.b16 %v93, %v92
    %96 = vrot.lane.b32.xlu0 %v94, 4
    %v97 = vpop.permute.xlu0 %96
    %98 = vrot.lane.b32.xlu0 %v95, 4
    %v99 = vpop.permute.xlu0 %98
    %v104 = vunpack.c.l.b16 %v72
    %v105 = vunpack.c.l.b16 %v73
    %v106 = vunpack.c.l.b16 %v74
    %v107 = vunpack.c.l.b16 %v75
    %v108 = vpack.c.b16 %v105, %v104
    %v109 = vpack.c.b16 %v107, %v106
    %110 = vrot.lane.b32.xlu0 %v108, 8
    %v111 = vpop.permute.xlu0 %110
    %112 = vrot.lane.b32.xlu0 %v109, 8
    %v113 = vpop.permute.xlu0 %112
    %vm114 = vcmask 31744
    %v117 = vsel %vm114, %v84, %v97
    %v120 = vsel %vm114, %v85, %v99
    %vm121 = vcmask 64512
    %v123 = vsel %vm121, %v117, %v111
    %v125 = vsel %vm121, %v120, %v113
    %v126 = vld [vmem:[%s1] sm:$0xf]
    %v127 = vld [vmem:[%s1 + $0x4] sm:$0x3]
    %v128 = vld [vmem:[%s2] sm:$0x1]
    %v130 = vperm.slane %v128, 0
    %v134 = vunpack.c.l.b16 %v126
    %v135 = vunpack.c.l.b16 %v127
    %v136 = vpack.c.b16 %v135, %v134
    %vm137 = vcmask 97280
    %v138 = vsel %vm137, %v123, 0
    %v140 = vsel %vm137, %v125, 0
    %vm142 = vcmask 1045504
    %v144 = vsel %vm142, %v136, 0
    %146 = vmatpush.bf16.msra.mxu0 0
    %147 = vmatpush.bf16.msra.mxu0 0
    %148 = vmatpush.bf16.msra.mxu0 0
    %149 = vmatpush.bf16.msra.mxu0 0
    %150 = vmatpush.bf16.msra.mxu0 0
    %151 = vmatpush.bf16.msra.mxu0 0
    %152 = vmatpush.bf16.msra.mxu0 0
    %153 = vmatpush.bf16.msra.mxu0 %v144
    %154 = vmatmul.bf16.gmra.mxu0 %v138
    %v155 = vpop.f32.mrf.mxu0
    %v156 = vadd.f32 %v130, %v155
    %v157 = vpop.f32.mrf.mxu0
    %v158 = vadd.f32 %v130, %v157
    %159 = vmatmul.bf16.gmra.mxu0 %v140
    %v160 = vpop.f32.mrf.mxu0
    %v161 = vadd.f32 %v130, %v160
    %v162 = vpop.f32.mrf.mxu0
    %v163 = vadd.f32 %v130, %v162
    %164 = vdwg.mxu0
    %v165 = vmax.f32 %v156, 0.0
    %v166 = vmax.f32 %v158, 0.0
    %v167 = vmax.f32 %v161, 0.0
    %v168 = vmax.f32 %v163, 0.0
    %v169 = vrot.slane %v165, 7
    %v170 = vrot.slane %v166, 7
    %v171 = vrot.slane %v167, 7
    %v172 = vrot.slane %v168, 7
    %v173 = vsel %vm50, %v171, %v172
    %v174 = vsel %vm50, %v170, %v171
    %v175 = vsel %vm50, %v169, %v170
    %v176 = vsel %vm50, %v172, %v169
    %v177 = vrot.slane %v165, 6
    %v178 = vrot.slane %v166, 6
    %v179 = vrot.slane %v167, 6
    %v180 = vrot.slane %v168, 6
    %v181 = vsel %vm59, %v179, %v180
    %v182 = vsel %vm59, %v178, %v179
    %v183 = vsel %vm59, %v177, %v178
    %v184 = vsel %vm59, %v180, %v177
    %v185 = vpack.c.bf16 %v184, %v184
    %v186 = vpack.c.bf16 %v183, %v183
    %v187 = vpack.c.bf16 %v182, %v182
    %v188 = vpack.c.bf16 %v181, %v181
    %v189 = vpack.c.bf16 %v176, %v176
    %v190 = vpack.c.bf16 %v175, %v175
    %v191 = vpack.c.bf16 %v174, %v174
    %v192 = vpack.c.bf16 %v173, %v173
    %v193 = vpack.c.bf16 %v165, %v165
    %v194 = vpack.c.bf16 %v166, %v166
    %v195 = vpack.c.bf16 %v167, %v167
    %v196 = vpack.c.bf16 %v168, %v168
    %v201 = vunpack.c.l.b16 %v185
    %v202 = vunpack.c.l.b16 %v186
    %v203 = vunpack.c.l.b16 %v187
    %v204 = vunpack.c.l.b16 %v188
    %v205 = vpack.c.b16 %v202, %v201
    %v206 = vpack.c.b16 %v204, %v203
    %v211 = vunpack.c.l.b16 %v189
    %v212 = vunpack.c.l.b16 %v190
    %v213 = vunpack.c.l.b16 %v191
    %v214 = vunpack.c.l.b16 %v192
    %v215 = vpack.c.b16 %v212, %v211
    %v216 = vpack.c.b16 %v214, %v213
    %217 = vrot.lane.b32.xlu0 %v215, 8
    %v218 = vpop.permute.xlu0 %217
    %219 = vrot.lane.b32.xlu0 %v216, 8
    %v220 = vpop.permute.xlu0 %219
    %v225 = vunpack.c.l.b16 %v193
    %v226 = vunpack.c.l.b16 %v194
    %v227 = vunpack.c.l.b16 %v195
    %v228 = vunpack.c.l.b16 %v196
    %v229 = vpack.c.b16 %v226, %v225
    %v230 = vpack.c.b16 %v228, %v227
    %231 = vrot.lane.b32.xlu0 %v229, 16
    %v232 = vpop.permute.xlu0 %231
    %233 = vrot.lane.b32.xlu0 %v230, 16
    %v234 = vpop.permute.xlu0 %233
    %v237 = vsel %vm121, %v205, %v218
    %v240 = vsel %vm121, %v206, %v220
    %vm241 = vcmask 130048
    %v243 = vsel %vm241, %v237, %v232
    %v245 = vsel %vm241, %v240, %v234
    %v246 = vld [vmem:[%s3] sm:$0xf]
    %v247 = vld [vmem:[%s3 + $0x4] sm:$0xf]
    %v248 = vld [vmem:[%s3 + $0x8] sm:$0xf]
    %v249 = vld [vmem:[%s4] sm:$0x1]
    %v251 = vperm.slane %v249, 0
    %v256 = vunpack.c.l.b16 %v246
    %v257 = vunpack.c.l.b16 %v247
    %v258 = vunpack.c.l.b16 %v248
    %v259 = vpack.c.b16 %v257, %v256
    %v260 = vpack.c.b16 %v258, %v258
    %vm262 = vcmask 195584
    %v263 = vsel %vm262, %v243, 0
    %v265 = vsel %vm262, %v245, 0
    %vm267 = vcmask 1043456
    %v269 = vsel %vm267, %v260, 0
    %271 = vmatpush.bf16.msra.mxu0 0
    %272 = vmatpush.bf16.msra.mxu0 0
    %273 = vmatpush.bf16.msra.mxu0 0
    %274 = vmatpush.bf16.msra.mxu0 0
    %275 = vmatpush.bf16.msra.mxu0 0
    %276 = vmatpush.bf16.msra.mxu0 0
    %277 = vmatpush.bf16.msra.mxu0 %v269
    %278 = vmatpush.bf16.msra.mxu0 %v259
    %279 = vmatmul.bf16.gmra.mxu0 %v263
    %v280 = vpop.f32.mrf.mxu0
    %v281 = vadd.f32 %v251, %v280
    %v282 = vpop.f32.mrf.mxu0
    %v283 = vadd.f32 %v251, %v282
    %284 = vmatmul.bf16.gmra.mxu0 %v265
    %v285 = vpop.f32.mrf.mxu0
    %v286 = vadd.f32 %v251, %v285
    %v287 = vpop.f32.mrf.mxu0
    %v288 = vadd.f32 %v251, %v287
    %289 = vdwg.mxu0
    %v290 = vmax.f32 %v281, 0.0
    %v291 = vmax.f32 %v283, 0.0
    %v292 = vmax.f32 %v286, 0.0
    %v293 = vmax.f32 %v288, 0.0
    %298 = vrot.lane.b32.xlu0 %v156, 120
    %v299 = vpop.permute.xlu0 %298
    %300 = vrot.lane.b32.xlu0 %v158, 120
    %v301 = vpop.permute.xlu0 %300
    %302 = vrot.lane.b32.xlu0 %v161, 120
    %v303 = vpop.permute.xlu0 %302
    %304 = vrot.lane.b32.xlu0 %v163, 120
    %v305 = vpop.permute.xlu0 %304
    %v310 = vadd.f32 %v290, %v299
    %v311 = vadd.f32 %v291, %v301
    %v312 = vadd.f32 %v292, %v303
    %v313 = vadd.f32 %v293, %v305
    %v314 = vmax.f32 %v310, 0.0
    %v315 = vmax.f32 %v311, 0.0
    %v316 = vmax.f32 %v312, 0.0
    %v317 = vmax.f32 %v313, 0.0
    %v318 = vrot.slane %v314, 7
    %v319 = vrot.slane %v315, 7
    %v320 = vrot.slane %v316, 7
    %v321 = vrot.slane %v317, 7
    %v322 = vsel %vm50, %v320, %v321
    %v323 = vsel %vm50, %v319, %v320
    %v324 = vsel %vm50, %v318, %v319
    %v325 = vsel %vm50, %v321, %v318
    %v326 = vrot.slane %v314, 6
    %v327 = vrot.slane %v315, 6
    %v328 = vrot.slane %v316, 6
    %v329 = vrot.slane %v317, 6
    %v330 = vsel %vm59, %v328, %v329
    %v331 = vsel %vm59, %v327, %v328
    %v332 = vsel %vm59, %v326, %v327
    %v333 = vsel %vm59, %v329, %v326
    %v334 = vpack.c.bf16 %v333, %v333
    %v335 = vpack.c.bf16 %v332, %v332
    %v336 = vpack.c.bf16 %v331, %v331
    %v337 = vpack.c.bf16 %v330, %v330
    %v338 = vpack.c.bf16 %v325, %v325
    %v339 = vpack.c.bf16 %v324, %v324
    %v340 = vpack.c.bf16 %v323, %v323
    %v341 = vpack.c.bf16 %v322, %v322
    %v342 = vpack.c.bf16 %v314, %v314
    %v343 = vpack.c.bf16 %v315, %v315
    %v344 = vpack.c.bf16 %v316, %v316
    %v345 = vpack.c.bf16 %v317, %v317
    %v350 = vunpack.c.l.b16 %v334
    %v351 = vunpack.c.l.b16 %v335
    %v352 = vunpack.c.l.b16 %v336
    %v353 = vunpack.c.l.b16 %v337
    %v354 = vpack.c.b16 %v351, %v350
    %v355 = vpack.c.b16 %v353, %v352
    %v360 = vunpack.c.l.b16 %v338
    %v361 = vunpack.c.l.b16 %v339
    %v362 = vunpack.c.l.b16 %v340
    %v363 = vunpack.c.l.b16 %v341
    %v364 = vpack.c.b16 %v361, %v360
    %v365 = vpack.c.b16 %v363, %v362
    %366 = vrot.lane.b32.xlu0 %v364, 8
    %v367 = vpop.permute.xlu0 %366
    %368 = vrot.lane.b32.xlu0 %v365, 8
    %v369 = vpop.permute.xlu0 %368
    %v374 = vunpack.c.l.b16 %v342
    %v375 = vunpack.c.l.b16 %v343
    %v376 = vunpack.c.l.b16 %v344
    %v377 = vunpack.c.l.b16 %v345
    %v378 = vpack.c.b16 %v375, %v374
    %v379 = vpack.c.b16 %v377, %v376
    %380 = vrot.lane.b32.xlu0 %v378, 16
    %v381 = vpop.permute.xlu0 %380
    %382 = vrot.lane.b32.xlu0 %v379, 16
    %v383 = vpop.permute.xlu0 %382
    %v386 = vsel %vm121, %v354, %v367
    %v389 = vsel %vm121, %v355, %v369
    %v391 = vsel %vm241, %v386, %v381
    %v393 = vsel %vm241, %v389, %v383
    %v394 = vld [vmem:[%s5] sm:$0xf]
    %v395 = vld [vmem:[%s5 + $0x4] sm:$0xf]
    %v396 = vld [vmem:[%s5 + $0x8] sm:$0xf]
    %v397 = vld [vmem:[%s6] sm:$0x1]
    %v399 = vperm.slane %v397, 0
    %v404 = vunpack.c.l.b16 %v394
    %v405 = vunpack.c.l.b16 %v395
    %v406 = vunpack.c.l.b16 %v396
    %v407 = vpack.c.b16 %v405, %v404
    %v408 = vpack.c.b16 %v406, %v406
    %v410 = vsel %vm262, %v391, 0
    %v412 = vsel %vm262, %v393, 0
    %v415 = vsel %vm267, %v408, 0
    %417 = vmatpush.bf16.msra.mxu0 0
    %418 = vmatpush.bf16.msra.mxu0 0
    %419 = vmatpush.bf16.msra.mxu0 0
    %420 = vmatpush.bf16.msra.mxu0 0
    %421 = vmatpush.bf16.msra.mxu0 0
    %422 = vmatpush.bf16.msra.mxu0 0
    %423 = vmatpush.bf16.msra.mxu0 %v415
    %424 = vmatpush.bf16.msra.mxu0 %v407
    %425 = vmatmul.bf16.gmra.mxu0 %v410
    %v426 = vpop.f32.mrf.mxu0
    %v427 = vadd.f32 %v399, %v426
    %v428 = vpop.f32.mrf.mxu0
    %v429 = vadd.f32 %v399, %v428
    %430 = vmatmul.bf16.gmra.mxu0 %v412
    %v431 = vpop.f32.mrf.mxu0
    %v432 = vadd.f32 %v399, %v431
    %v433 = vpop.f32.mrf.mxu0
    %v434 = vadd.f32 %v399, %v433
    %435 = vdwg.mxu0
    %v436 = vmax.f32 %v427, 0.0
    %v437 = vmax.f32 %v429, 0.0
    %v438 = vmax.f32 %v432, 0.0
    %v439 = vmax.f32 %v434, 0.0
    %v440 = vrot.slane %v436, 7
    %v441 = vrot.slane %v437, 7
    %v442 = vrot.slane %v438, 7
    %v443 = vrot.slane %v439, 7
    %v444 = vsel %vm50, %v442, %v443
    %v445 = vsel %vm50, %v441, %v442
    %v446 = vsel %vm50, %v440, %v441
    %v447 = vsel %vm50, %v443, %v440
    %v448 = vrot.slane %v436, 6
    %v449 = vrot.slane %v437, 6
    %v450 = vrot.slane %v438, 6
    %v451 = vrot.slane %v439, 6
    %v452 = vsel %vm59, %v450, %v451
    %v453 = vsel %vm59, %v449, %v450
    %v454 = vsel %vm59, %v448, %v449
    %v455 = vsel %vm59, %v451, %v448
    %v456 = vpack.c.bf16 %v455, %v455
    %v457 = vpack.c.bf16 %v454, %v454
    %v458 = vpack.c.bf16 %v453, %v453
    %v459 = vpack.c.bf16 %v452, %v452
    %v460 = vpack.c.bf16 %v447, %v447
    %v461 = vpack.c.bf16 %v446, %v446
    %v462 = vpack.c.bf16 %v445, %v445
    %v463 = vpack.c.bf16 %v444, %v444
    %v464 = vpack.c.bf16 %v436, %v436
    %v465 = vpack.c.bf16 %v437, %v437
    %v466 = vpack.c.bf16 %v438, %v438
    %v467 = vpack.c.bf16 %v439, %v439
    %v472 = vunpack.c.l.b16 %v456
    %v473 = vunpack.c.l.b16 %v457
    %v474 = vunpack.c.l.b16 %v458
    %v475 = vunpack.c.l.b16 %v459
    %v476 = vpack.c.b16 %v473, %v472
    %v477 = vpack.c.b16 %v475, %v474
    %v482 = vunpack.c.l.b16 %v460
    %v483 = vunpack.c.l.b16 %v461
    %v484 = vunpack.c.l.b16 %v462
    %v485 = vunpack.c.l.b16 %v463
    %v486 = vpack.c.b16 %v483, %v482
    %v487 = vpack.c.b16 %v485, %v484
    %488 = vrot.lane.b32.xlu0 %v486, 16
    %v489 = vpop.permute.xlu0 %488
    %490 = vrot.lane.b32.xlu0 %v487, 16
    %v491 = vpop.permute.xlu0 %490
    %v496 = vunpack.c.l.b16 %v464
    %v497 = vunpack.c.l.b16 %v465
    %v498 = vunpack.c.l.b16 %v466
    %v499 = vunpack.c.l.b16 %v467
    %v500 = vpack.c.b16 %v497, %v496
    %v501 = vpack.c.b16 %v499, %v498
    %502 = vrot.lane.b32.xlu0 %v500, 32
    %v503 = vpop.permute.xlu0 %502
    %504 = vrot.lane.b32.xlu0 %v501, 32
    %v505 = vpop.permute.xlu0 %504
    %v508 = vsel %vm241, %v476, %v489
    %v511 = vsel %vm241, %v477, %v491
    %vm512 = vcmask 261120
    %v514 = vsel %vm512, %v508, %v503
    %v516 = vsel %vm512, %v511, %v505
    %v517 = vld [vmem:[%s7] sm:$0xf]
    %v518 = vld [vmem:[%s7 + $0x4] sm:$0xf]
    %v519 = vld [vmem:[%s7 + $0x8] sm:$0xf]
    %v520 = vld [vmem:[%s7 + $0xc] sm:$0xf]
    %v521 = vld [vmem:[%s7 + $0x10] sm:$0xf]
    %v522 = vld [vmem:[%s7 + $0x14] sm:$0xf]
    %v523 = vld [vmem:[%s8] sm:$0x1]
    %v525 = vperm.slane %v523, 0
    %v533 = vunpack.c.l.b16 %v517
    %v534 = vunpack.c.l.b16 %v518
    %v535 = vunpack.c.l.b16 %v519
    %v536 = vunpack.c.l.b16 %v520
    %v537 = vunpack.c.l.b16 %v521
    %v538 = vunpack.c.l.b16 %v522
    %v539 = vpack.c.b16 %v534, %v533
    %v540 = vpack.c.b16 %v536, %v535
    %v541 = vpack.c.b16 %v538, %v537
    %vm545 = vcmask 392192
    %v546 = vsel %vm545, %v514, 0
    %v548 = vsel %vm545, %v516, 0
    %550 = vmatpush.bf16.msra.mxu0 0
    %551 = vmatpush.bf16.msra.mxu0 0
    %552 = vmatpush.bf16.msra.mxu0 0
    %553 = vmatpush.bf16.msra.mxu0 0
    %554 = vmatpush.bf16.msra.mxu0 0
    %555 = vmatpush.bf16.msra.mxu0 %v541
    %556 = vmatpush.bf16.msra.mxu0 %v540
    %557 = vmatpush.bf16.msra.mxu0 %v539
    %558 = vmatmul.bf16.gmra.mxu0 %v546
    %v559 = vpop.f32.mrf.mxu0
    %v560 = vpop.f32.mrf.mxu0
    %v561 = vadd.f32 %v525, %v560
    %562 = vmatmul.bf16.gmra.mxu0 %v548
    %v563 = vpop.f32.mrf.mxu0
    %v564 = vpop.f32.mrf.mxu0
    %v565 = vadd.f32 %v525, %v564
    %566 = vdwg.mxu0
    %v567 = vmax.f32 %v561, 0.0
    %v568 = vmax.f32 %v565, 0.0
    %571 = vrot.lane.b32.xlu0 %v429, 112
    %v572 = vpop.permute.xlu0 %571
    %573 = vrot.lane.b32.xlu0 %v434, 112
    %v574 = vpop.permute.xlu0 %573
    %v577 = vadd.f32 %v567, %v572
    %v578 = vadd.f32 %v568, %v574
    %v579 = vmax.f32 %v577, 0.0
    %v580 = vmax.f32 %v578, 0.0
    %v583 = vrot.slane %v579, 7
    %v584 = vrot.slane %v580, 6
    %vm585 = vcmask 1041409
    %v586 = vsel %vm585, %v584, %v583
    %vm588 = vcmask 1041408
    %v589 = vsel %vm588, %v586, 0.0
    %v590 = vpack.c.bf16 %v589, %v589
    %v591 = vld [vmem:[%s9] sm:$0xf]
    %v592 = vld [vmem:[%s9 + $0x4] sm:$0xf]
    %v593 = vld [vmem:[%s10] sm:$0x1]
    %v595 = vperm.slane %v593, 0
    %v599 = vunpack.c.l.b16 %v591
    %v600 = vunpack.c.l.b16 %v592
    %v601 = vpack.c.b16 %v600, %v599
    %v604 = vsel %vm241, %v590, 0
    %606 = vmatpush.bf16.msra.mxu0 0
    %607 = vmatpush.bf16.msra.mxu0 0
    %608 = vmatpush.bf16.msra.mxu0 0
    %609 = vmatpush.bf16.msra.mxu0 0
    %610 = vmatpush.bf16.msra.mxu0 0
    %611 = vmatpush.bf16.msra.mxu0 0
    %612 = vmatpush.bf16.msra.mxu0 0
    %613 = vmatpush.bf16.msra.mxu0 %v601
    %614 = vmatmul.bf16.gmra.mxu0 %v604
    %v615 = vpop.f32.mrf.mxu0
    %v616 = vadd.f32 %v595, %v615
    %v617 = vpop.f32.mrf.mxu0
    %618 = vdwg.mxu0
    %619 = vst [vmem:[#allocation2] sm:$0xff] %v616
    // Predicated region
    $region46: #{tpu_custom_call.1} parent=1 // pred_check
      _
    $region47: #{tpu_custom_call.1} parent=1 // pred_check_branch
      %621 = sbr.rel (0) target = $region49
    $region48: #{tpu_custom_call.1} parent=1 // pred_region
      %623 = vsyncadd [#allocation3], 0
      %s625 = sshll.u32 [#allocation2], 4
      %s626 = int_to_ptr.vmem [resolvable:$true] %s625
      %s627 = sshll.u32 %s11, 4
      %s628 = int_to_ptr.hbm [resolvable:$true] %s627
      %630 = dma.vmem_to_hbm [thread:$0]  %s626, 128, %s628, [#allocation3]
    $region49: #{tpu_custom_call.1} parent=1 // pred_fallthru
      _
    // Predicated region
    $region50: #{tpu_custom_call.1} parent=1 // pred_check
      _
    $region51: #{tpu_custom_call.1} parent=1 // pred_check_branch
      %632 = sbr.rel (0) target = $region53
    $region52: #{tpu_custom_call.1} parent=1 // pred_region
      %634 = dma.done [#allocation3], 128
    $region53: #{tpu_custom_call.1} parent=1 // pred_fallthru
      _
    %635 = vsyncpa [#allocation3], 1

</llo_original>
